<compile_context>
chip_gen: v6e
topology: v6e:2x2x1
jax: 0.10.0
libtpu: 0.0.40
codegen_flags: <defaults>
</compile_context>

<pallas_src>
import math

import jax
import jax.numpy as jnp
from jax.experimental import pallas as pl
from jax.experimental.pallas import tpu as pltpu


def token_embedding_kernel(x_ref, w_ref, o_ref):
    # x_ref: (bB, L, C), w_ref: (3*C, D), o_ref: (bB, L, D)
    x = x_ref[...]
    bB, L, C = x.shape
    D = o_ref.shape[-1]

    # Circular taps along the sequence axis, per batch element (axis=1), so no
    # wrap crosses a batch boundary inside the multi-batch block:
    #   x_prev[:, l] = x[:, (l-1) % L]   (kernel tap k=0)
    #   x_next[:, l] = x[:, (l+1) % L]   (kernel tap k=2)
    x_prev = jnp.concatenate([x[:, L - 1:, :], x[:, :L - 1, :]], axis=1)
    x_next = jnp.concatenate([x[:, 1:, :], x[:, :1, :]], axis=1)

    # Fuse the three taps into a single contraction of size 3*C on the MXU.
    x_cat = jnp.concatenate([x_prev, x, x_next], axis=-1)        # (bB, L, 3C)
    x_2d = x_cat.reshape(bB * L, 3 * C)                          # lane dim kept

    out = jnp.dot(x_2d, w_ref[...], preferred_element_type=jnp.float32)
    o_ref[...] = out.reshape(bB, L, D).astype(o_ref.dtype)


def _pick_batch_block(B, L, C, D, in_itemsize, out_itemsize,
                      vmem_budget_bytes=16 * 1024 * 1024):
    """Largest divisor of B whose (double-buffered) block footprint fits the
    budget, keeping >= 2 grid steps when B >= 2 (feed both v7x TensorCores)."""
    per_b = (2 * (L * C * in_itemsize + L * D * out_itemsize)   # pipelined I/O
             + 3 * L * C * in_itemsize                           # x_cat temp
             + L * D * 4)                                        # f32 matmul result
    cap = max(1, vmem_budget_bytes // max(per_b, 1))
    if B >= 2:
        cap = min(cap, pl.cdiv(B, 2))
    best = 1
    for d in range(1, min(B, cap) + 1):
        if B % d == 0:
            best = d
    return best


def token_embedding(x, weight, *, block_b=None):
    """x: (B, L, C_in); weight: (3, C_in, D). Returns (B, L, D) in x.dtype."""
    B, L, C = x.shape
    K, C2, D = weight.shape
    assert K == 3 and C2 == C
    # Row order of the flattened weight matches the [x_prev | x | x_next]
    # column order (tap-major, then channel).
    w_flat = weight.reshape(3 * C, D)

    if block_b is None:
        block_b = _pick_batch_block(B, L, C, D,
                                    x.dtype.itemsize, x.dtype.itemsize)
    assert B % block_b == 0, "block_b must divide B"

    return pl.pallas_call(
        token_embedding_kernel,
        out_shape=jax.ShapeDtypeStruct((B, L, D), x.dtype),
        grid_spec=pltpu.PrefetchScalarGridSpec(
            num_scalar_prefetch=0,
            grid=(B // block_b,),
            in_specs=[
                pl.BlockSpec((block_b, L, C), lambda b: (b, 0, 0)),
                pl.BlockSpec((3 * C, D), lambda b: (0, 0)),   # resident weight
            ],
            out_specs=pl.BlockSpec((block_b, L, D), lambda b: (b, 0, 0)),
        ),
        compiler_params=pltpu.CompilerParams(
            dimension_semantics=("parallel",),
            vmem_limit_bytes=32 * 1024 * 1024,
        ),
    )(x, w_flat)


def reference(x, weight):
    """Pure-JAX reference of the circular k=3 conv (channels-last)."""
    B, L, C = x.shape
    xp = jnp.concatenate([x[:, -1:, :], x, x[:, :1, :]], axis=1)  # (B, L+2, C)
    return (
        jnp.einsum('blc,cd->bld', xp[:, 0:L, :], weight[0])
        + jnp.einsum('blc,cd->bld', xp[:, 1:L + 1, :], weight[1])
        + jnp.einsum('blc,cd->bld', xp[:, 2:L + 2, :], weight[2])
    )


if __name__ == "__main__":
    # Small shapes consistent with TimesNet: enc_in=7, d_model lane-dense (128).
    B, L, c_in, d_model = 4, 16, 7, 128

    key = jax.random.PRNGKey(0)
    kx, kw = jax.random.split(key)

    x = jax.random.normal(kx, (B, L, c_in), dtype=jnp.float32)

    # Kaiming normal (fan_in mode, leaky_relu a=0.01), matching nn.init on the
    # PyTorch weight of shape (d_model, c_in, 3): fan_in = c_in * 3.
    fan_in = c_in * 3
    gain = math.sqrt(2.0 / (1.0 + 0.01 ** 2))
    std = gain / math.sqrt(fan_in)
    w_torch_layout = std * jax.random.normal(kw, (d_model, c_in, 3),
                                             dtype=jnp.float32)
    weight = jnp.transpose(w_torch_layout, (2, 1, 0))   # (3, c_in, d_model)

    out = jax.block_until_ready(token_embedding(x, weight))
    ref = reference(x, weight)

    assert out.shape == (B, L, d_model)
    assert jnp.allclose(out, ref, atol=1e-4, rtol=1e-4), "mismatch vs reference"

    print("KERNEL_OK")
</pallas_src>

<mosaic_0001>
module attributes {stable_mosaic.version = 11 : i64} {
  func.func @token_embedding_kernel(%arg0: i32, %arg1: memref<2x16x7xf32, #tpu.memory_space<vmem>>, %arg2: memref<21x128xf32, #tpu.memory_space<vmem>>, %arg3: memref<2x16x128xf32, #tpu.memory_space<vmem>>) attributes {dimension_semantics = [#tpu.dimension_semantics<parallel>], iteration_bounds = array<i64: 2>, scalar_prefetch = 0 : i64, scratch_operands = 0 : i64, tpu.core_type = #tpu.core_type<tc>, window_params = [{transform_indices = @transform_0, window_bounds = array<i64: 2, 16, 7>}, {pipeline_mode = #tpu.pipeline_mode<synchronous>, transform_indices = @transform_1, window_bounds = array<i64: 21, 128>}, {transform_indices = @transform_2, window_bounds = array<i64: 2, 16, 128>}]} {
    %c0 = arith.constant 0 : index
    %c0_0 = arith.constant 0 : index
    %c0_1 = arith.constant 0 : index
    %0 = vector.load %arg1[%c0, %c0_0, %c0_1] : memref<2x16x7xf32, #tpu.memory_space<vmem>>, vector<2x16x7xf32>
    %1 = vector.extract_strided_slice %0 {offsets = [0, 15, 0], sizes = [2, 1, 7], strides = [1, 1, 1]} : vector<2x16x7xf32> to vector<2x1x7xf32>
    %2 = vector.extract_strided_slice %0 {offsets = [0, 0, 0], sizes = [2, 15, 7], strides = [1, 1, 1]} : vector<2x16x7xf32> to vector<2x15x7xf32>
    %3 = tpu.concatenate %1, %2 in 1 : vector<2x1x7xf32>, vector<2x15x7xf32> -> vector<2x16x7xf32>
    %4 = vector.extract_strided_slice %0 {offsets = [0, 1, 0], sizes = [2, 15, 7], strides = [1, 1, 1]} : vector<2x16x7xf32> to vector<2x15x7xf32>
    %5 = vector.extract_strided_slice %0 {offsets = [0, 0, 0], sizes = [2, 1, 7], strides = [1, 1, 1]} : vector<2x16x7xf32> to vector<2x1x7xf32>
    %6 = tpu.concatenate %4, %5 in 1 : vector<2x15x7xf32>, vector<2x1x7xf32> -> vector<2x16x7xf32>
    %7 = tpu.concatenate %3, %0, %6 in 2 : vector<2x16x7xf32>, vector<2x16x7xf32>, vector<2x16x7xf32> -> vector<2x16x21xf32>
    %8 = vector.shape_cast %7 : vector<2x16x21xf32> to vector<32x21xf32>
    %c0_2 = arith.constant 0 : index
    %c0_3 = arith.constant 0 : index
    %9 = vector.load %arg2[%c0_2, %c0_3] : memref<21x128xf32, #tpu.memory_space<vmem>>, vector<21x128xf32>
    %cst = arith.constant dense<0.000000e+00> : vector<32x128xf32>
    %10 = tpu.matmul %8, %9, %cst {dimension_numbers = #tpu.dot_dimension_numbers<[1], [0], [0], [1], [0, 0, 1, 1], [], []>} : vector<32x21xf32>, vector<21x128xf32>, vector<32x128xf32> -> vector<32x128xf32>
    %11 = vector.shape_cast %10 : vector<32x128xf32> to vector<2x16x128xf32>
    %c0_4 = arith.constant 0 : index
    %c0_5 = arith.constant 0 : index
    %c0_6 = arith.constant 0 : index
    %12 = vector.load %arg3[%c0_4, %c0_5, %c0_6] : memref<2x16x128xf32, #tpu.memory_space<vmem>>, vector<2x16x128xf32>
    tpu.vector_store %arg3[%c0_4, %c0_5, %c0_6], %11 {strides = array<i32>} : memref<2x16x128xf32, #tpu.memory_space<vmem>>, vector<2x16x128xf32>,
    return
  }
  func.func @transform_0(%arg0: i32) -> (i32, i32, i32) {
    %c0_i32 = arith.constant 0 : i32
    %c0_i32_0 = arith.constant 0 : i32
    %c0_i32_1 = arith.constant 0 : i32
    return %arg0, %c0_i32, %c0_i32_0 : i32, i32, i32
  }
  func.func @transform_1(%arg0: i32) -> (i32, i32) {
    %c0_i32 = arith.constant 0 : i32
    %c0_i32_0 = arith.constant 0 : i32
    %c0_i32_1 = arith.constant 0 : i32
    return %c0_i32, %c0_i32_0 : i32, i32
  }
  func.func @transform_2(%arg0: i32) -> (i32, i32, i32) {
    %c0_i32 = arith.constant 0 : i32
    %c0_i32_0 = arith.constant 0 : i32
    %c0_i32_1 = arith.constant 0 : i32
    return %arg0, %c0_i32, %c0_i32_0 : i32, i32, i32
  }
}

</mosaic_0001>

<llo_original>
// kernel: tpu_custom_call.1
$region0: #{tpu_custom_call.1}
  #allocation0 [shape = 'u32[]', space=smem, size = 0x4, offset = 0x4, fixed_abs, tag = 'smem constant byte address 0x4 - core index']
  #allocation1 [shape = 'u32[144,128]{1,0:T(1,128)}', space=vmem, size = 0x12000, scoped, tag = 'internal scratch']
  %s0 = inlined_call_operand.vmem [shape: f32[4,16,7], index: 0, kind: input, shape index: {}]
  %s1 = inlined_call_operand.vmem [shape: f32[21,128], index: 1, kind: input, shape index: {}]
  %s2 = inlined_call_operand.hbm [shape: f32[4,16,128], index: 2, kind: output, shape index: {}]
  %s3 = sld [smem:[#allocation0]]
  $region41: #{tpu_custom_call.1} parent=0
    _
  %s5 = ssub.s32 1, %s3
  %s6 = scalar_select 0, %s5, %s3
  $region1: #{tpu_custom_call.1} parent=0
    #allocation2 [shape = 'u8[32768]{0}', space=vmem, size = 0x8000, scoped, tag = 'output window, operand 0']
    #allocation3 [shape = 's32[2]{0}', space=sflag, size = 0x8, scoped, tag = 'scoped memory for tpu_custom_call.1']
    %7 = vsyncpa [#allocation3], 0
    %s8 = scalar_lea.sflag [#allocation3], 1
    %9 = vsyncpa %s8, 0
    loop: start=0, step=1, limit=4
    $region2: #{tpu_custom_call.1} parent=1 // loop_pre_header
      _
    $region3: #{tpu_custom_call.1} parent=1 // loop_header
      %s11 = sphi 0, %s15
      %p12 = scmp.ge.s32.totalorder %s11, 4
      %s21 = sphi 0, %s23
      %s24 = sphi 0, %s21
      %s25 = sphi 0, %s24
      %s41 = sphi 0, %s25
      %s45 = sphi 0, %s45
      %s47 = sphi 0, %s45
      %s48 = sphi 0, %s47
      %s62 = sphi 0, %s48
      %s68 = sphi 0, %s70
      %s71 = sphi 0, %s68
      %s72 = sphi 0, %s71
      %s88 = sphi 0, %s72
    $region4: #{tpu_custom_call.1} parent=1 // loop_header_branch
      %14 = sbr.rel (%p12) target = $region8
    $region5: #{tpu_custom_call.1} parent=1 // loop_body
      %s16 = ssub.s32 %s11, 1
      %s17 = ssub.s32 %s11, 2
      %s18 = sadd.s32 %s11, 1
      %s19 = ssub.s32 %s11, %s18
      %p20 = scmp.eq.s32.totalorder %s19, 0
      %s22 = sadd.s32 %s21, 1
      %s23 = scalar_select %p20, %s21, %s22
      %p26 = pneg %p20
      %p27 = scmp.eq.s32.totalorder %s11, 1
      %p28 = por %p26, %p27
      %p29 = scmp.ne.s32.totalorder %s21, %s24
      %p30 = scmp.eq.s32.totalorder %s11, 0
      %p31 = por %p29, %p30
      %p32 = scmp.ne.s32.totalorder %s21, %s24
      %p33 = scmp.eq.s32.totalorder %s16, 1
      %p34 = por %p32, %p33
      %p35 = scmp.ne.s32.totalorder %s24, %s25
      %p36 = scmp.eq.s32.totalorder %s16, 0
      %p37 = por %p35, %p36
      %p38 = scmp.ne.s32.totalorder %s24, %s25
      %p39 = scmp.eq.s32.totalorder %s17, 1
      %p40 = por %p38, %p39
      %p42 = scmp.ne.s32.totalorder %s25, %s41
      %p43 = scmp.eq.s32.totalorder %s17, 0
      %p44 = por %p42, %p43
      %s46 = sadd.s32 %s45, 1
      %p49 = scmp.eq.s32.totalorder %s11, 1
      %p50 = scmp.ne.s32.totalorder %s45, %s47
      %p51 = scmp.eq.s32.totalorder %s11, 0
      %p52 = por %p50, %p51
      %p53 = scmp.ne.s32.totalorder %s45, %s47
      %p54 = scmp.eq.s32.totalorder %s16, 1
      %p55 = por %p53, %p54
      %p56 = scmp.ne.s32.totalorder %s47, %s48
      %p57 = scmp.eq.s32.totalorder %s16, 0
      %p58 = por %p56, %p57
      %p59 = scmp.ne.s32.totalorder %s47, %s48
      %p60 = scmp.eq.s32.totalorder %s17, 1
      %p61 = por %p59, %p60
      %p63 = scmp.ne.s32.totalorder %s48, %s62
      %p64 = scmp.eq.s32.totalorder %s17, 0
      %p65 = por %p63, %p64
      %s66 = ssub.s32 %s11, %s18
      %p67 = scmp.eq.s32.totalorder %s66, 0
      %s69 = sadd.s32 %s68, 1
      %s70 = scalar_select %p67, %s68, %s69
      %p73 = pneg %p67
      %p74 = scmp.eq.s32.totalorder %s11, 1
      %p75 = por %p73, %p74
      %p76 = scmp.ne.s32.totalorder %s68, %s71
      %p77 = scmp.eq.s32.totalorder %s11, 0
      %p78 = por %p76, %p77
      %p79 = scmp.ne.s32.totalorder %s68, %s71
      %p80 = scmp.eq.s32.totalorder %s16, 1
      %p81 = por %p79, %p80
      %p82 = scmp.ne.s32.totalorder %s71, %s72
      %p83 = scmp.eq.s32.totalorder %s16, 0
      %p84 = por %p82, %p83
      %p85 = scmp.ne.s32.totalorder %s71, %s72
      %p86 = scmp.eq.s32.totalorder %s17, 1
      %p87 = por %p85, %p86
      %p89 = scmp.ne.s32.totalorder %s72, %s88
      %p90 = scmp.eq.s32.totalorder %s17, 0
      %p91 = por %p89, %p90
      %p92 = scmp.le.s32.totalorder 1, %s11
      %p93 = scmp.lt.s32.totalorder %s11, 3
      %p94 = pnand %p92, %p93
      %p95 = pneg %p94
      // Predicated region
      $region9: #{tpu_custom_call.1} parent=5 // pred_check
        _
      $region10: #{tpu_custom_call.1} parent=5 // pred_check_branch
        %97 = sbr.rel (%p94) target = $region12
      $region11: #{tpu_custom_call.1} parent=5 // pred_region
        %s98 = ssub.s32 %s11, 1
        // Predicated region
        $region13: #{tpu_custom_call.1} parent=11 // pred_check
          %p99 = pneg %p58
        $region14: #{tpu_custom_call.1} parent=11 // pred_check_branch
          %101 = sbr.rel (%p99) target = $region16
        $region15: #{tpu_custom_call.1} parent=11 // pred_region
          _
        $region16: #{tpu_custom_call.1} parent=11 // pred_fallthru
          _
      $region12: #{tpu_custom_call.1} parent=5 // pred_fallthru
        _
      %p102 = scmp.lt.s32.totalorder %s11, 2
      // Predicated region
      $region17: #{tpu_custom_call.1} parent=5 // pred_check
        %p103 = pneg %p102
      $region18: #{tpu_custom_call.1} parent=5 // pred_check_branch
        %105 = sbr.rel (%p103) target = $region20
      $region19: #{tpu_custom_call.1} parent=5 // pred_region
        // Predicated region
        $region21: #{tpu_custom_call.1} parent=19 // pred_check
          %p106 = pneg %p31
        $region22: #{tpu_custom_call.1} parent=19 // pred_check_branch
          %108 = sbr.rel (%p106) target = $region24
        $region23: #{tpu_custom_call.1} parent=19 // pred_region
          %s109 = smul.u32 2, %s11
          %p110 = scmp.lt.s32.totalorder %s109, 3
          %s111 = scalar_select %p110, %s109, 3
          %s112 = smul.addr %s111, 2
          %s113 = smul.addr %s112, 8
          %s114 = scalar_lea.vmem %s0, %s113
          %s115 = smul.u32 2, %s11
        $region24: #{tpu_custom_call.1} parent=19 // pred_fallthru
          _
      $region20: #{tpu_custom_call.1} parent=5 // pred_fallthru
        _
      %p116 = scmp.le.s32.totalorder 1, %s11
      %p117 = scmp.lt.s32.totalorder %s11, 3
      %p118 = pnand %p116, %p117
      %p119 = pneg %p118
      // Predicated region
      $region25: #{tpu_custom_call.1} parent=5 // pred_check
        _
      $region26: #{tpu_custom_call.1} parent=5 // pred_check_branch
        %121 = sbr.rel (%p118) target = $region28
      $region27: #{tpu_custom_call.1} parent=5 // pred_region
        %s122 = ssub.s32 %s11, 1
        %s123 = smul.u32 2, %s16
        %p124 = scmp.lt.s32.totalorder %s123, 3
        %s125 = scalar_select %p124, %s123, 3
        %s126 = smul.addr %s125, 2
        %s127 = smul.addr %s126, 8
        %s128 = scalar_lea.vmem %s0, %s127
        %p129 = pneg %p37
        %p130 = pneg %p34
        %p131 = pneg %p58
        %p132 = pneg %p55
        %p133 = pneg %p84
        %p134 = pneg %p81
        %s135 = sand.u32 %s71, 1
        %s136 = scalar_lea.sflag [#allocation3], %s135
        %s137 = sand.u32 %s71, 1
        %s138 = smul.addr %s137, 32
        %s139 = scalar_lea.vmem [#allocation2], %s138
        %s140 = smul.u32 2, %s16
        %p141 = scmp.lt.s32.totalorder %s140, 3
        %s142 = scalar_select %p141, %s140, 3
        %s143 = smul.addr %s142, 2
        %s144 = smul.addr %s143, 8
        %s145 = scalar_lea.vmem %s0, %s144
        %s146 = smul.u32 2, %s16
        %s147 = smul.u32 2, %s16
        %v148 = vld [vmem:[%s145] sm:$0xff]
        %v149 = vld [vmem:[%s145 + $0x8] sm:$0xff]
        %v150 = vld [vmem:[%s145 + $0x10] sm:$0xff]
        %v151 = vld [vmem:[%s145 + $0x18] sm:$0xff]
        %v154 = vrot.slane %v149, 7
        %v155 = vrot.slane %v151, 7
        %vm160 = vcmask 1040384
        %v161 = vrot.slane %v148, 7
        %v162 = vsel %vm160, %v161, %v154
        %v163 = vrot.slane %v150, 7
        %v164 = vsel %vm160, %v163, %v155
        %v169 = vsel %vm160, %v154, %v161
        %v170 = vsel %vm160, %v155, %v163
        %vm171 = vcmask 1046528
        %v172 = vrot.slane %v148, 1
        %v173 = vrot.slane %v149, 1
        %v174 = vsel %vm171, %v172, %v173
        %v175 = vrot.slane %v150, 1
        %v176 = vrot.slane %v151, 1
        %v177 = vsel %vm171, %v175, %v176
        %v182 = vsel %vm171, %v173, %v172
        %v183 = vsel %vm171, %v176, %v175
        %184 = vrot.lane.b32.xlu0 %v148, 7
        %v185 = vpop.permute.xlu0 %184
        %186 = vrot.lane.b32.xlu0 %v149, 7
        %v187 = vpop.permute.xlu0 %186
        %188 = vrot.lane.b32.xlu0 %v150, 7
        %v189 = vpop.permute.xlu0 %188
        %190 = vrot.lane.b32.xlu0 %v151, 7
        %v191 = vpop.permute.xlu0 %190
        %198 = vrot.lane.b32.xlu0 %v174, 14
        %v199 = vpop.permute.xlu0 %198
        %200 = vrot.lane.b32.xlu0 %v182, 14
        %v201 = vpop.permute.xlu0 %200
        %202 = vrot.lane.b32.xlu0 %v177, 14
        %v203 = vpop.permute.xlu0 %202
        %204 = vrot.lane.b32.xlu0 %v183, 14
        %v205 = vpop.permute.xlu0 %204
        %vm210 = vcmask 56320
        %v211 = vsel %vm210, %v169, %v185
        %v212 = vsel %vm210, %v162, %v187
        %v213 = vsel %vm210, %v170, %v189
        %v214 = vsel %vm210, %v164, %v191
        %vm215 = vcmask 113664
        %v216 = vsel %vm215, %v211, %v199
        %v217 = vsel %vm215, %v212, %v201
        %v218 = vsel %vm215, %v213, %v203
        %v219 = vsel %vm215, %v214, %v205
        %v220 = vld [vmem:[%s1] sm:$0xff]
        %v221 = vld [vmem:[%s1 + $0x8] sm:$0xff]
        %v222 = vld [vmem:[%s1 + $0x10] sm:$0x1f]
        %vm223 = vcmask 171008
        %v225 = vsel %vm223, %v216, 0
        %v228 = vsel %vm223, %v217, 0
        %v231 = vsel %vm223, %v218, 0
        %v234 = vsel %vm223, %v219, 0
        %vm236 = vcmask 1044480
        %v238 = vsel %vm236, %v222, 0
        %240 = vmatprep.subr.mxu0 0.0
        %241 = vmatpush1.msra.mxu0 0.0
        %242 = vmatprep.subr.mxu0 0.0
        %243 = vmatpush1.msra.mxu0 0.0
        %244 = vmatprep.subr.mxu0 0.0
        %245 = vmatpush1.msra.mxu0 0.0
        %246 = vmatprep.subr.mxu0 0.0
        %247 = vmatpush1.msra.mxu0 0.0
        %248 = vmatprep.subr.mxu0 0.0
        %249 = vmatpush1.msra.mxu0 0.0
        %250 = vmatprep.subr.mxu0 0.0
        %251 = vmatpush1.msra.mxu0 0.0
        %252 = vmatprep.subr.mxu0 0.0
        %253 = vmatpush1.msra.mxu0 0.0
        %254 = vmatprep.subr.mxu0 0.0
        %255 = vmatpush1.msra.mxu0 0.0
        %256 = vmatprep.subr.mxu0 0.0
        %257 = vmatpush1.msra.mxu0 0.0
        %258 = vmatprep.subr.mxu0 0.0
        %259 = vmatpush1.msra.mxu0 0.0
        %260 = vmatprep.subr.mxu0 0.0
        %261 = vmatpush1.msra.mxu0 0.0
        %262 = vmatprep.subr.mxu0 0.0
        %263 = vmatpush1.msra.mxu0 0.0
        %264 = vmatprep.subr.mxu0 0.0
        %265 = vmatpush1.msra.mxu0 0.0
        %266 = vmatprep.subr.mxu0 0.0
        %267 = vmatpush1.msra.mxu0 %v238
        %268 = vmatprep.subr.mxu0 0.0
        %269 = vmatpush1.msra.mxu0 %v221
        %270 = vmatprep.subr.mxu0 0.0
        %271 = vmatpush1.msra.mxu0 %v220
        %272 = vmatprep.subr.mxu0 0.0
        %273 = vmatpush2.msra.mxu0 0.0
        %274 = vmatprep.subr.mxu0 0.0
        %275 = vmatpush2.msra.mxu0 0.0
        %276 = vmatprep.subr.mxu0 0.0
        %277 = vmatpush2.msra.mxu0 0.0
        %278 = vmatprep.subr.mxu0 0.0
        %279 = vmatpush2.msra.mxu0 0.0
        %280 = vmatprep.subr.mxu0 0.0
        %281 = vmatpush2.msra.mxu0 0.0
        %282 = vmatprep.subr.mxu0 0.0
        %283 = vmatpush2.msra.mxu0 0.0
        %284 = vmatprep.subr.mxu0 0.0
        %285 = vmatpush2.msra.mxu0 0.0
        %286 = vmatprep.subr.mxu0 0.0
        %287 = vmatpush2.msra.mxu0 0.0
        %288 = vmatprep.subr.mxu0 0.0
        %289 = vmatpush2.msra.mxu0 0.0
        %290 = vmatprep.subr.mxu0 0.0
        %291 = vmatpush2.msra.mxu0 0.0
        %292 = vmatprep.subr.mxu0 0.0
        %293 = vmatpush2.msra.mxu0 0.0
        %294 = vmatprep.subr.mxu0 0.0
        %295 = vmatpush2.msra.mxu0 0.0
        %296 = vmatprep.subr.mxu0 0.0
        %297 = vmatpush2.msra.mxu0 0.0
        %298 = vmatprep.subr.mxu0 0.0
        %299 = vmatpush2.msra.mxu0 0.0
        %300 = vmatprep.subr.mxu0 0.0
        %301 = vmatpush2.msra.mxu0 0.0
        %302 = vmatprep.subr.mxu0 0.0
        %303 = vmatpush2.msra.mxu0 0.0
        %304 = vmatprep.mubr.f32.mxu0 0.0
        %305 = vmatmul.mubr.f32.gmra.mxu0 %v225
        %v306 = vpop.f32.mrf.mxu0
        %v307 = vadd.f32 0.0, %v306
        %v308 = vpop.f32.mrf.mxu0
        %309 = vmatprep.mubr.f32.mxu0 0.0
        %310 = vmatmul.mubr.f32.gmra.mxu0 %v228
        %v311 = vpop.f32.mrf.mxu0
        %v312 = vadd.f32 0.0, %v311
        %v313 = vpop.f32.mrf.mxu0
        %314 = vmatprep.mubr.f32.mxu0 0.0
        %315 = vmatmul.mubr.f32.gmra.mxu0 %v231
        %v316 = vpop.f32.mrf.mxu0
        %v317 = vadd.f32 0.0, %v316
        %v318 = vpop.f32.mrf.mxu0
        %319 = vmatprep.mubr.f32.mxu0 0.0
        %320 = vmatmul.mubr.f32.gmra.mxu0 %v234
        %v321 = vpop.f32.mrf.mxu0
        %v322 = vadd.f32 0.0, %v321
        %v323 = vpop.f32.mrf.mxu0
        %324 = vdwg.mxu0
        %325 = vst [vmem:[%s139] sm:$0xff] %v307
        %326 = vst [vmem:[%s139 + $0x8] sm:$0xff] %v312
        %327 = vst [vmem:[%s139 + $0x10] sm:$0xff] %v317
        %328 = vst [vmem:[%s139 + $0x18] sm:$0xff] %v322
        %s329 = sand.u32 %s71, 1
        %s330 = scalar_lea.sflag [#allocation3], %s329
        %s331 = sand.u32 %s71, 1
        %s332 = smul.addr %s331, 32
        %s333 = scalar_lea.vmem [#allocation2], %s332
        // Predicated region
        $region29: #{tpu_custom_call.1} parent=27 // pred_check
          %p334 = pneg %p81
        $region30: #{tpu_custom_call.1} parent=27 // pred_check_branch
          %336 = sbr.rel (%p334) target = $region32
        $region31: #{tpu_custom_call.1} parent=27 // pred_region
          %s337 = smul.u32 2, %s16
          %s339 = ssub.s32 512, 512
          %340 = vsyncadd %s330, %s339
          %s341 = smul.addr %s337, 2
          %s342 = smul.addr %s341, 128
          %s343 = scalar_lea.hbm %s2, %s342
          %s344 = sshll.u32 %s333, 4
          %s345 = int_to_ptr.vmem [resolvable:$true] %s344
          %350 = dma.vmem_to_hbm [thread:$0]  %s345, 512, %s343, %s330, 128, 128, 8
        $region32: #{tpu_custom_call.1} parent=27 // pred_fallthru
          _
      $region28: #{tpu_custom_call.1} parent=5 // pred_fallthru
        _
      %p351 = scmp.le.s32.totalorder 2, %s11
      // Predicated region
      $region33: #{tpu_custom_call.1} parent=5 // pred_check
        %p352 = pneg %p351
      $region34: #{tpu_custom_call.1} parent=5 // pred_check_branch
        %354 = sbr.rel (%p352) target = $region36
      $region35: #{tpu_custom_call.1} parent=5 // pred_region
        %s355 = ssub.s32 %s11, 2
        // Predicated region
        $region37: #{tpu_custom_call.1} parent=35 // pred_check
          %p356 = pneg %p87
        $region38: #{tpu_custom_call.1} parent=35 // pred_check_branch
          %358 = sbr.rel (%p356) target = $region40
        $region39: #{tpu_custom_call.1} parent=35 // pred_region
          %s359 = sand.u32 %s72, 1
          %s360 = scalar_lea.sflag [#allocation3], %s359
          %s361 = sand.u32 %s72, 1
          %s362 = smul.addr %s361, 32
          %s363 = scalar_lea.vmem [#allocation2], %s362
          %364 = dma.done %s360, 512
        $region40: #{tpu_custom_call.1} parent=35 // pred_fallthru
          _
      $region36: #{tpu_custom_call.1} parent=5 // pred_fallthru
        _
    $region6: #{tpu_custom_call.1} parent=1 // loop_footer
      %s15 = sadd.s32 1, %s11
    $region7: #{tpu_custom_call.1} parent=1 // loop_footer_branch
      %10 = sbr.rel target = $region3
    $region8: #{tpu_custom_call.1} parent=1 // loop_exit
      _
    %365 = vsyncpa [#allocation3], 1
    %s366 = scalar_lea.sflag [#allocation3], 1
    %367 = vsyncpa %s366, 1

</llo_original>
